<compile_context>
chip_gen: v6e
topology: v6e:2x2x1
jax: 0.10.0
libtpu: 0.0.40
codegen_flags: <defaults>
</compile_context>

<pallas_src>
import functools

import jax
import jax.numpy as jnp
from jax import lax
from jax.experimental import pallas as pl
from jax.experimental.pallas import tpu as pltpu


def _l2_distance_kernel(q_ref, kq_ref, k_ref, o_ref, rowsum_ref, qscaled_ref, *,
                        inv_temp_sq, two_inv_temp_sq):
    """Computes one (TQ, TK) output tile for one batch element.

    q_ref:       (TQ, D)  query rows of this q-tile          (resident across ki)
    kq_ref:      (TQ, D)  key rows at the *query* indices     (resident across ki)
    k_ref:       (TK, D)  key rows of this k-tile             (streams along ki)
    o_ref:       (TQ, TK) output tile
    rowsum_ref:  (TQ, 1)  f32 scratch: (|q|^2 + |key[q]|^2)/temp^2, once per q-tile
    qscaled_ref: (TQ, D)  scratch: q * (2/temp^2) in the MXU feed dtype, once per q-tile
    """
    ki = pl.program_id(2)

    @pl.when(ki == 0)
    def _():
        q = q_ref[...].astype(jnp.float32)
        kq = kq_ref[...].astype(jnp.float32)
        # Fold 1/temperature^2 under the sqrt once per q-tile.
        rowsum_ref[...] = (
            jnp.sum(q * q + kq * kq, axis=-1, keepdims=True) * inv_temp_sq)
        # Fold 2/temperature^2 into the MXU LHS once per q-tile (TQ*D elements,
        # ~TK/D times cheaper than a per-step (TQ,TK) multiply).
        qscaled_ref[...] = (q * two_inv_temp_sq).astype(qscaled_ref.dtype)

    k_tile = k_ref[...]
    if k_tile.dtype != qscaled_ref.dtype:
        k_tile = k_tile.astype(qscaled_ref.dtype)

    # cross2[q, k] = 2/temp^2 * <query[q], key[k]>  -- MXU, contract last dims.
    cross2 = lax.dot_general(
        qscaled_ref[...], k_tile,
        dimension_numbers=(((1,), (1,)), ((), ())),
        preferred_element_type=jnp.float32,
    )  # (TQ, TK) f32

    # Epilogue: sub, max, sqrt, cast (no full-tile multiplies).
    dist = jnp.maximum(rowsum_ref[...] - cross2, 0.0)
    o_ref[...] = jnp.sqrt(dist).astype(o_ref.dtype)


def _choose_tile(dim: int, target: int, align: int) -> int:
    """Full dim if it fits under `target`, otherwise an `align`-aligned target."""
    if dim <= target:
        return dim
    return max((target // align) * align, align)


def l2_distance(query, key, temperature: float = 1.0, *,
                tq: int = 512, tk: int = 1024, mxu_dtype=None):
    """Pallas TPU implementation of L2Distance.forward.

    query: (B, Q, D)
    key:   (B, K, D), with K == Q (required by the reference module's broadcast)
    mxu_dtype: optional dtype for the MXU cross-term feed (e.g. jnp.bfloat16 on
               v6e/v7x where f32 matmul is emulated).  None => native dtype.
    returns: (B, Q, K) in query.dtype
    """
    assert query.ndim == 3 and key.ndim == 3
    B, Q, D = query.shape
    Bk, K, Dk = key.shape
    assert B == Bk and D == Dk
    assert Q == K, "reference PyTorch broadcast requires Q == K"

    # TQ aligned to sublanes (8), TK aligned to lanes (128); partial edge tiles
    # are handled by the cdiv grid (out-of-range stores are masked by Pallas).
    TQ = _choose_tile(Q, tq, 8)
    TK = _choose_tile(K, tk, 128)
    n_q_tiles = pl.cdiv(Q, TQ)
    n_k_tiles = pl.cdiv(K, TK)
    grid = (B, n_q_tiles, n_k_tiles)

    out_dtype = query.dtype
    mxu_dt = jnp.dtype(query.dtype) if mxu_dtype is None else jnp.dtype(mxu_dtype)
    in_itemsize = jnp.dtype(query.dtype).itemsize
    out_itemsize = jnp.dtype(out_dtype).itemsize

    # Actual VMEM footprint: double-buffered tiles + scratch + f32 epilogue temp.
    tile_bytes = (
        2 * (TQ * D + TQ * D + TK * D) * in_itemsize   # q, kq, k tiles (x2 buffers)
        + 2 * TQ * TK * out_itemsize                    # output tile (x2 buffers)
        + TQ * 128 * 4                                  # rowsum scratch (lane-padded)
        + TQ * D * mxu_dt.itemsize                      # scaled-q scratch
        + TQ * TK * 4                                   # f32 MXU result / epilogue temp
    )
    vmem_limit = int(min(3 * tile_bytes + (8 << 20), 56 << 20))

    cost = pl.CostEstimate(
        flops=2 * B * Q * K * D,
        transcendentals=B * Q * K,  # one sqrt per output element
        # query + kq read once per q-tile; key re-read once per q-tile.
        bytes_accessed=int(in_itemsize * (B * Q * D + B * K * D
                                          + B * n_q_tiles * K * D)
                           + out_itemsize * B * Q * K),
    )

    temp = float(temperature)
    kernel = functools.partial(
        _l2_distance_kernel,
        inv_temp_sq=float(1.0 / (temp * temp)),
        two_inv_temp_sq=float(2.0 / (temp * temp)),
    )

    return pl.pallas_call(
        kernel,
        out_shape=jax.ShapeDtypeStruct((B, Q, K), out_dtype),
        grid_spec=pltpu.PrefetchScalarGridSpec(
            num_scalar_prefetch=0,
            grid=grid,
            in_specs=[
                # query q-tile: resident across the inner k-tile loop
                pl.BlockSpec((pl.Squeezed(), TQ, D), lambda b, qi, ki: (b, qi, 0)),
                # key rows at the *query* indices (PyTorch broadcast), also resident
                pl.BlockSpec((pl.Squeezed(), TQ, D), lambda b, qi, ki: (b, qi, 0)),
                # key k-tile: streams along the innermost grid axis
                pl.BlockSpec((pl.Squeezed(), TK, D), lambda b, qi, ki: (b, ki, 0)),
            ],
            out_specs=pl.BlockSpec(
                (pl.Squeezed(), TQ, TK), lambda b, qi, ki: (b, qi, ki)),
            scratch_shapes=[
                pltpu.VMEM((TQ, 1), jnp.float32),   # (|q|^2 + |key[q]|^2)/temp^2
                pltpu.VMEM((TQ, D), mxu_dt),        # q * 2/temp^2 (MXU LHS feed)
            ],
        ),
        compiler_params=pltpu.CompilerParams(
            # ki stays sequential: scratch written at ki == 0 is reused for every
            # k-tile of the same (b, q-tile).  b and q-tile shard across TCs.
            dimension_semantics=("parallel", "parallel", "arbitrary"),
            vmem_limit_bytes=vmem_limit,
        ),
        cost_estimate=cost,
    )(query, key, key)


def _l2_distance_ref(query, key, temperature: float = 1.0):
    # Pure-JAX reference mirroring the PyTorch code (including the Q==K broadcast).
    q_sq = jnp.sum(query.astype(jnp.float32) ** 2, axis=-1, keepdims=True)  # (B, Q, 1)
    k_sq = jnp.sum(key.astype(jnp.float32) ** 2, axis=-1, keepdims=True)    # (B, K, 1)
    cross = jnp.einsum("bqd,bkd->bqk", query, key,
                       preferred_element_type=jnp.float32)                   # (B, Q, K)
    dist = q_sq + k_sq - 2.0 * cross        # k_sq broadcast-indexed by the query index
    dist = jnp.maximum(dist, 0.0)
    return (jnp.sqrt(dist) / temperature).astype(query.dtype)


if __name__ == "__main__":
    rng = jax.random.PRNGKey(0)
    k1, k2, k3, k4, k5, k6 = jax.random.split(rng, 6)
    temperature = 2.0

    # Small shapes consistent with the module: batch=2, seq(Q=K)=8, hidden D=32.
    B, S, D = 2, 8, 32
    q_small = jax.random.normal(k1, (B, S, D), dtype=jnp.float32)
    k_small = jax.random.normal(k2, (B, S, D), dtype=jnp.float32)
    out_small = jax.block_until_ready(l2_distance(q_small, k_small, temperature))
    ref_small = _l2_distance_ref(q_small, k_small, temperature)
    assert out_small.shape == (B, S, S)
    assert jnp.allclose(out_small, ref_small, atol=1e-4, rtol=1e-4), "small-case mismatch"

    # Tiled case exercising the (B, Q//TQ, K//TK) grid path (TQ=512, TK=1024).
    B2, S2, D2 = 2, 2048, 128
    q_big = jax.random.normal(k3, (B2, S2, D2), dtype=jnp.float32)
    k_big = jax.random.normal(k4, (B2, S2, D2), dtype=jnp.float32)
    out_big = jax.block_until_ready(l2_distance(q_big, k_big, temperature))
    ref_big = _l2_distance_ref(q_big, k_big, temperature)
    assert out_big.shape == (B2, S2, S2)
    assert jnp.allclose(out_big, ref_big, atol=1e-3, rtol=1e-3), "tiled-case mismatch"

    # Ragged case (Q = K not a multiple of 128/8): cdiv grid + masked edge tile.
    B3, S3, D3 = 2, 600, 64
    q_rag = jax.random.normal(k5, (B3, S3, D3), dtype=jnp.float32)
    k_rag = jax.random.normal(k6, (B3, S3, D3), dtype=jnp.float32)
    out_rag = jax.block_until_ready(l2_distance(q_rag, k_rag, temperature))
    ref_rag = _l2_distance_ref(q_rag, k_rag, temperature)
    assert out_rag.shape == (B3, S3, S3)
    assert jnp.allclose(out_rag, ref_rag, atol=1e-3, rtol=1e-3), "ragged-case mismatch"

    print("KERNEL_OK")
</pallas_src>

<mosaic_0001>
module attributes {stable_mosaic.version = 11 : i64} {
  func.func @_l2_distance_kernel(%arg0: i32, %arg1: i32, %arg2: i32, %arg3: memref<1x8x32xf32, #tpu.memory_space<vmem>>, %arg4: memref<1x8x32xf32, #tpu.memory_space<vmem>>, %arg5: memref<1x8x32xf32, #tpu.memory_space<vmem>>, %arg6: memref<1x8x8xf32, #tpu.memory_space<vmem>>, %arg7: memref<8x1xf32, #tpu.memory_space<vmem>>, %arg8: memref<8x32xf32, #tpu.memory_space<vmem>>) attributes {dimension_semantics = [#tpu.dimension_semantics<parallel>, #tpu.dimension_semantics<parallel>, #tpu.dimension_semantics<arbitrary>], iteration_bounds = array<i64: 2, 1, 1>, scalar_prefetch = 0 : i64, scratch_operands = 2 : i64, tpu.core_type = #tpu.core_type<tc>, window_params = [{transform_indices = @transform_0, window_bounds = array<i64: 1, 8, 32>}, {transform_indices = @transform_1, window_bounds = array<i64: 1, 8, 32>}, {transform_indices = @transform_2, window_bounds = array<i64: 1, 8, 32>}, {transform_indices = @transform_3, window_bounds = array<i64: 1, 8, 8>}]} {
    %c0_i32 = arith.constant 0 : i32
    %0 = arith.cmpi eq, %arg2, %c0_i32 : i32
    %1 = arith.extui %0 : i1 to i32
    %c0_i32_0 = arith.constant 0 : i32
    %2 = arith.cmpi ne, %1, %c0_i32_0 : i32
    scf.if %2 {
      %c0_11 = arith.constant 0 : index
      %c0_12 = arith.constant 0 : index
      %c0_13 = arith.constant 0 : index
      %16 = vector.load %arg3[%c0_11, %c0_12, %c0_13] : memref<1x8x32xf32, #tpu.memory_space<vmem>>, vector<1x8x32xf32>
      %17 = vector.shape_cast %16 : vector<1x8x32xf32> to vector<8x32xf32>
      %c0_14 = arith.constant 0 : index
      %c0_15 = arith.constant 0 : index
      %c0_16 = arith.constant 0 : index
      %18 = vector.load %arg4[%c0_14, %c0_15, %c0_16] : memref<1x8x32xf32, #tpu.memory_space<vmem>>, vector<1x8x32xf32>
      %19 = vector.shape_cast %18 : vector<1x8x32xf32> to vector<8x32xf32>
      %20 = arith.mulf %17, %17 : vector<8x32xf32>
      %21 = arith.mulf %19, %19 : vector<8x32xf32>
      %22 = arith.addf %20, %21 : vector<8x32xf32>
      %cst_17 = arith.constant dense<0.000000e+00> : vector<8xf32>
      %23 = vector.multi_reduction <add>, %22, %cst_17 [1] : vector<8x32xf32> to vector<8xf32>
      %24 = vector.shape_cast %23 : vector<8xf32> to vector<8x1xf32>
      %cst_18 = arith.constant 2.500000e-01 : f32
      %25 = vector.broadcast %cst_18 : f32 to vector<8x1xf32>
      %26 = arith.mulf %24, %25 : vector<8x1xf32>
      %c0_19 = arith.constant 0 : index
      %c0_20 = arith.constant 0 : index
      %27 = vector.load %arg7[%c0_19, %c0_20] : memref<8x1xf32, #tpu.memory_space<vmem>>, vector<8x1xf32>
      tpu.vector_store %arg7[%c0_19, %c0_20], %26 {strides = array<i32>} : memref<8x1xf32, #tpu.memory_space<vmem>>, vector<8x1xf32>,
      %cst_21 = arith.constant 5.000000e-01 : f32
      %28 = vector.broadcast %cst_21 : f32 to vector<8x32xf32>
      %29 = arith.mulf %17, %28 : vector<8x32xf32>
      %c0_22 = arith.constant 0 : index
      %c0_23 = arith.constant 0 : index
      %30 = vector.load %arg8[%c0_22, %c0_23] : memref<8x32xf32, #tpu.memory_space<vmem>>, vector<8x32xf32>
      tpu.vector_store %arg8[%c0_22, %c0_23], %29 {strides = array<i32>} : memref<8x32xf32, #tpu.memory_space<vmem>>, vector<8x32xf32>,
    } else {
    }
    %c0 = arith.constant 0 : index
    %c0_1 = arith.constant 0 : index
    %c0_2 = arith.constant 0 : index
    %3 = vector.load %arg5[%c0, %c0_1, %c0_2] : memref<1x8x32xf32, #tpu.memory_space<vmem>>, vector<1x8x32xf32>
    %4 = vector.shape_cast %3 : vector<1x8x32xf32> to vector<8x32xf32>
    %c0_3 = arith.constant 0 : index
    %c0_4 = arith.constant 0 : index
    %5 = vector.load %arg8[%c0_3, %c0_4] : memref<8x32xf32, #tpu.memory_space<vmem>>, vector<8x32xf32>
    %cst = arith.constant dense<0.000000e+00> : vector<8x8xf32>
    %6 = tpu.matmul %5, %4, %cst {dimension_numbers = #tpu.dot_dimension_numbers<[1], [1], [0], [0], [0, 0, 1, 0], [], []>} : vector<8x32xf32>, vector<8x32xf32>, vector<8x8xf32> -> vector<8x8xf32>
    %c0_5 = arith.constant 0 : index
    %c0_6 = arith.constant 0 : index
    %7 = vector.load %arg7[%c0_5, %c0_6] : memref<8x1xf32, #tpu.memory_space<vmem>>, vector<8x1xf32>
    %8 = vector.broadcast %7 : vector<8x1xf32> to vector<8x8xf32>
    %9 = arith.subf %8, %6 : vector<8x8xf32>
    %cst_7 = arith.constant 0.000000e+00 : f32
    %10 = vector.broadcast %cst_7 : f32 to vector<8x8xf32>
    %11 = arith.maximumf %9, %10 : vector<8x8xf32>
    %12 = math.sqrt %11 : vector<8x8xf32>
    %c0_8 = arith.constant 0 : index
    %c0_9 = arith.constant 0 : index
    %c0_10 = arith.constant 0 : index
    %13 = vector.load %arg6[%c0_8, %c0_9, %c0_10] : memref<1x8x8xf32, #tpu.memory_space<vmem>>, vector<1x8x8xf32>
    %14 = vector.shape_cast %13 : vector<1x8x8xf32> to vector<8x8xf32>
    %15 = vector.shape_cast %12 : vector<8x8xf32> to vector<1x8x8xf32>
    tpu.vector_store %arg6[%c0_8, %c0_9, %c0_10], %15 {strides = array<i32>} : memref<1x8x8xf32, #tpu.memory_space<vmem>>, vector<1x8x8xf32>,
    return
  }
  func.func @transform_0(%arg0: i32, %arg1: i32, %arg2: i32) -> (i32, i32, i32) {
    %c0_i32 = arith.constant 0 : i32
    %c0_i32_0 = arith.constant 0 : i32
    return %arg0, %arg1, %c0_i32 : i32, i32, i32
  }
  func.func @transform_1(%arg0: i32, %arg1: i32, %arg2: i32) -> (i32, i32, i32) {
    %c0_i32 = arith.constant 0 : i32
    %c0_i32_0 = arith.constant 0 : i32
    return %arg0, %arg1, %c0_i32 : i32, i32, i32
  }
  func.func @transform_2(%arg0: i32, %arg1: i32, %arg2: i32) -> (i32, i32, i32) {
    %c0_i32 = arith.constant 0 : i32
    %c0_i32_0 = arith.constant 0 : i32
    return %arg0, %arg2, %c0_i32 : i32, i32, i32
  }
  func.func @transform_3(%arg0: i32, %arg1: i32, %arg2: i32) -> (i32, i32, i32) {
    %c0_i32 = arith.constant 0 : i32
    return %arg0, %arg1, %arg2 : i32, i32, i32
  }
}

</mosaic_0001>

<llo_original>
// kernel: tpu_custom_call.1
$region0: #{tpu_custom_call.1}
  #allocation0 [shape = 'u32[]', space=smem, size = 0x4, offset = 0x4, fixed_abs, tag = 'smem constant byte address 0x4 - core index']
  #allocation1 [shape = 'u32[144,128]{1,0:T(1,128)}', space=vmem, size = 0x12000, scoped, tag = 'internal scratch']
  #allocation2 [shape = 'f32[8,1]{1,0:T(8,128)}', space=vmem, size = 0x1000, scoped, tag = 'scratch operand']
  #allocation3 [shape = 'f32[8,32]{1,0:T(8,128)}', space=vmem, size = 0x1000, scoped, tag = 'scratch operand']
  %s0 = inlined_call_operand.hbm [shape: f32[2,8,32], index: 0, kind: input, shape index: {}]
  %s1 = inlined_call_operand.hbm [shape: f32[2,8,32], index: 1, kind: input, shape index: {}]
  %s2 = inlined_call_operand.hbm [shape: f32[2,8,32], index: 2, kind: input, shape index: {}]
  %s3 = inlined_call_operand.hbm [shape: f32[2,8,8], index: 3, kind: output, shape index: {}]
  %s4 = sld [smem:[#allocation0]]
  $region61: #{tpu_custom_call.1} parent=0
    _
  %s6 = ssub.s32 1, %s4
  %s7 = scalar_select 0, %s6, %s4
  $region1: #{tpu_custom_call.1} parent=0
    #allocation4 [shape = 'u8[8192]{0}', space=vmem, size = 0x2000, scoped, tag = 'input window, operand 0']
    #allocation5 [shape = 's32[2]{0}', space=sflag, size = 0x8, scoped, tag = 'scoped memory for tpu_custom_call.1']
    #allocation6 [shape = 's32[2]{0}', space=sflag, size = 0x8, scoped, tag = 'scoped memory for tpu_custom_call.1']
    #allocation7 [shape = 'u8[8192]{0}', space=vmem, size = 0x2000, scoped, tag = 'input window, operand 1']
    #allocation8 [shape = 's32[2]{0}', space=sflag, size = 0x8, scoped, tag = 'scoped memory for tpu_custom_call.1']
    #allocation9 [shape = 'u8[8192]{0}', space=vmem, size = 0x2000, scoped, tag = 'input window, operand 2']
    #allocation10 [shape = 'u8[8192]{0}', space=vmem, size = 0x2000, scoped, tag = 'output window, operand 0']
    %8 = vsyncpa [#allocation5], 0
    %s9 = scalar_lea.sflag [#allocation5], 1
    %10 = vsyncpa %s9, 0
    %11 = vsyncpa [#allocation8], 0
    %s12 = scalar_lea.sflag [#allocation8], 1
    %13 = vsyncpa %s12, 0
    %14 = vsyncpa [#allocation6], 0
    %s15 = scalar_lea.sflag [#allocation6], 1
    %16 = vsyncpa %s15, 0
    loop: start=0, step=1, limit=4
    $region2: #{tpu_custom_call.1} parent=1 // loop_pre_header
      _
    $region3: #{tpu_custom_call.1} parent=1 // loop_header
      %s18 = sphi 0, %s22
      %p19 = scmp.ge.s32.totalorder %s18, 4
      %s25 = sphi 0, %s44
      %s26 = sphi 0, %s40
      %s27 = sphi 0, %s36
      %s28 = sphi 0, %s25
      %s29 = sphi 0, %s26
      %s30 = sphi 0, %s27
      %s31 = sphi 0, %s28
      %s32 = sphi 0, %s29
      %s33 = sphi 0, %s30
      %s49 = sphi 0, %s51
      %s52 = sphi 0, %s49
      %s53 = sphi 0, %s52
      %s69 = sphi 0, %s53
      %s77 = sphi 0, %s79
      %s80 = sphi 0, %s77
      %s81 = sphi 0, %s80
      %s97 = sphi 0, %s81
      %s105 = sphi 0, %s107
      %s108 = sphi 0, %s105
      %s109 = sphi 0, %s108
      %s125 = sphi 0, %s109
      %s135 = sphi 0, %s137
      %s138 = sphi 0, %s135
      %s139 = sphi 0, %s138
      %s155 = sphi 0, %s139
    $region4: #{tpu_custom_call.1} parent=1 // loop_header_branch
      %21 = sbr.rel (%p19) target = $region8
    $region5: #{tpu_custom_call.1} parent=1 // loop_body
      %s23 = ssub.s32 %s18, 1
      %s24 = ssub.s32 %s18, 2
      %s34 = sadd.s32 1, %s27
      %p35 = scmp.ge.s32.totalorder %s34, 1
      %s36 = scalar_select %p35, 0, %s34
      %s37 = sadd.s32 1, %s26
      %s38 = scalar_select %p35, %s37, %s26
      %p39 = scmp.ge.s32.totalorder %s38, 1
      %s40 = scalar_select %p39, 0, %s38
      %s41 = sadd.s32 1, %s25
      %s42 = scalar_select %p39, %s41, %s25
      %p43 = scmp.ge.s32.totalorder %s42, 2
      %s44 = scalar_select %p43, 0, %s42
      %s45 = ssub.s32 %s25, %s44
      %s46 = ssub.s32 %s26, %s40
      %s47 = sor.u32 %s45, %s46
      %p48 = scmp.eq.s32.totalorder %s47, 0
      %s50 = sadd.s32 %s49, 1
      %s51 = scalar_select %p48, %s49, %s50
      %p54 = pneg %p48
      %p55 = scmp.eq.s32.totalorder %s18, 1
      %p56 = por %p54, %p55
      %p57 = scmp.ne.s32.totalorder %s49, %s52
      %p58 = scmp.eq.s32.totalorder %s18, 0
      %p59 = por %p57, %p58
      %p60 = scmp.ne.s32.totalorder %s49, %s52
      %p61 = scmp.eq.s32.totalorder %s23, 1
      %p62 = por %p60, %p61
      %p63 = scmp.ne.s32.totalorder %s52, %s53
      %p64 = scmp.eq.s32.totalorder %s23, 0
      %p65 = por %p63, %p64
      %p66 = scmp.ne.s32.totalorder %s52, %s53
      %p67 = scmp.eq.s32.totalorder %s24, 1
      %p68 = por %p66, %p67
      %p70 = scmp.ne.s32.totalorder %s53, %s69
      %p71 = scmp.eq.s32.totalorder %s24, 0
      %p72 = por %p70, %p71
      %s73 = ssub.s32 %s25, %s44
      %s74 = ssub.s32 %s26, %s40
      %s75 = sor.u32 %s73, %s74
      %p76 = scmp.eq.s32.totalorder %s75, 0
      %s78 = sadd.s32 %s77, 1
      %s79 = scalar_select %p76, %s77, %s78
      %p82 = pneg %p76
      %p83 = scmp.eq.s32.totalorder %s18, 1
      %p84 = por %p82, %p83
      %p85 = scmp.ne.s32.totalorder %s77, %s80
      %p86 = scmp.eq.s32.totalorder %s18, 0
      %p87 = por %p85, %p86
      %p88 = scmp.ne.s32.totalorder %s77, %s80
      %p89 = scmp.eq.s32.totalorder %s23, 1
      %p90 = por %p88, %p89
      %p91 = scmp.ne.s32.totalorder %s80, %s81
      %p92 = scmp.eq.s32.totalorder %s23, 0
      %p93 = por %p91, %p92
      %p94 = scmp.ne.s32.totalorder %s80, %s81
      %p95 = scmp.eq.s32.totalorder %s24, 1
      %p96 = por %p94, %p95
      %p98 = scmp.ne.s32.totalorder %s81, %s97
      %p99 = scmp.eq.s32.totalorder %s24, 0
      %p100 = por %p98, %p99
      %s101 = ssub.s32 %s25, %s44
      %s102 = ssub.s32 %s27, %s36
      %s103 = sor.u32 %s101, %s102
      %p104 = scmp.eq.s32.totalorder %s103, 0
      %s106 = sadd.s32 %s105, 1
      %s107 = scalar_select %p104, %s105, %s106
      %p110 = pneg %p104
      %p111 = scmp.eq.s32.totalorder %s18, 1
      %p112 = por %p110, %p111
      %p113 = scmp.ne.s32.totalorder %s105, %s108
      %p114 = scmp.eq.s32.totalorder %s18, 0
      %p115 = por %p113, %p114
      %p116 = scmp.ne.s32.totalorder %s105, %s108
      %p117 = scmp.eq.s32.totalorder %s23, 1
      %p118 = por %p116, %p117
      %p119 = scmp.ne.s32.totalorder %s108, %s109
      %p120 = scmp.eq.s32.totalorder %s23, 0
      %p121 = por %p119, %p120
      %p122 = scmp.ne.s32.totalorder %s108, %s109
      %p123 = scmp.eq.s32.totalorder %s24, 1
      %p124 = por %p122, %p123
      %p126 = scmp.ne.s32.totalorder %s109, %s125
      %p127 = scmp.eq.s32.totalorder %s24, 0
      %p128 = por %p126, %p127
      %s129 = ssub.s32 %s25, %s44
      %s130 = ssub.s32 %s26, %s40
      %s131 = sor.u32 %s129, %s130
      %s132 = ssub.s32 %s27, %s36
      %s133 = sor.u32 %s131, %s132
      %p134 = scmp.eq.s32.totalorder %s133, 0
      %s136 = sadd.s32 %s135, 1
      %s137 = scalar_select %p134, %s135, %s136
      %p140 = pneg %p134
      %p141 = scmp.eq.s32.totalorder %s18, 1
      %p142 = por %p140, %p141
      %p143 = scmp.ne.s32.totalorder %s135, %s138
      %p144 = scmp.eq.s32.totalorder %s18, 0
      %p145 = por %p143, %p144
      %p146 = scmp.ne.s32.totalorder %s135, %s138
      %p147 = scmp.eq.s32.totalorder %s23, 1
      %p148 = por %p146, %p147
      %p149 = scmp.ne.s32.totalorder %s138, %s139
      %p150 = scmp.eq.s32.totalorder %s23, 0
      %p151 = por %p149, %p150
      %p152 = scmp.ne.s32.totalorder %s138, %s139
      %p153 = scmp.eq.s32.totalorder %s24, 1
      %p154 = por %p152, %p153
      %p156 = scmp.ne.s32.totalorder %s139, %s155
      %p157 = scmp.eq.s32.totalorder %s24, 0
      %p158 = por %p156, %p157
      %p159 = scmp.le.s32.totalorder 1, %s18
      %p160 = scmp.lt.s32.totalorder %s18, 3
      %p161 = pnand %p159, %p160
      %p162 = pneg %p161
      // Predicated region
      $region9: #{tpu_custom_call.1} parent=5 // pred_check
        _
      $region10: #{tpu_custom_call.1} parent=5 // pred_check_branch
        %164 = sbr.rel (%p161) target = $region12
      $region11: #{tpu_custom_call.1} parent=5 // pred_region
        %s165 = ssub.s32 %s18, 1
      $region12: #{tpu_custom_call.1} parent=5 // pred_fallthru
        _
      %p166 = scmp.lt.s32.totalorder %s18, 2
      // Predicated region
      $region13: #{tpu_custom_call.1} parent=5 // pred_check
        %p167 = pneg %p166
      $region14: #{tpu_custom_call.1} parent=5 // pred_check_branch
        %169 = sbr.rel (%p167) target = $region16
      $region15: #{tpu_custom_call.1} parent=5 // pred_region
        // Predicated region
        $region17: #{tpu_custom_call.1} parent=15 // pred_check
          %p170 = pneg %p59
        $region18: #{tpu_custom_call.1} parent=15 // pred_check_branch
          %172 = sbr.rel (%p170) target = $region20
        $region19: #{tpu_custom_call.1} parent=15 // pred_region
          %s173 = sand.u32 %s49, 1
          %s174 = scalar_lea.sflag [#allocation5], %s173
          %s175 = sand.u32 %s49, 1
          %s176 = smul.addr %s175, 8
          %s177 = scalar_lea.vmem [#allocation4], %s176
          %s179 = ssub.s32 128, 128
          %180 = vsyncadd %s174, %s179
          %s181 = sadd.s32 %s26, %s25
          %s182 = smul.addr %s181, 128
          %s183 = scalar_lea.hbm %s0, %s182
          %s185 = sshll.u32 %s177, 4
          %s186 = int_to_ptr.vmem [resolvable:$true] %s185
          %188 = dma.hbm_to_vmem [thread:$0]  %s183, 128, %s186, %s174
        $region20: #{tpu_custom_call.1} parent=15 // pred_fallthru
          _
        // Predicated region
        $region21: #{tpu_custom_call.1} parent=15 // pred_check
          %p189 = pneg %p87
        $region22: #{tpu_custom_call.1} parent=15 // pred_check_branch
          %191 = sbr.rel (%p189) target = $region24
        $region23: #{tpu_custom_call.1} parent=15 // pred_region
          %s192 = sand.u32 %s18, 1
          %s193 = scalar_lea.sflag [#allocation8], %s192
          %s194 = sand.u32 %s77, 1
          %s195 = smul.addr %s194, 8
          %s196 = scalar_lea.vmem [#allocation7], %s195
          %s198 = ssub.s32 128, 128
          %199 = vsyncadd %s193, %s198
          %s200 = sadd.s32 %s26, %s25
          %s201 = smul.addr %s200, 128
          %s202 = scalar_lea.hbm %s1, %s201
          %s204 = sshll.u32 %s196, 4
          %s205 = int_to_ptr.vmem [resolvable:$true] %s204
          %207 = dma.hbm_to_vmem [thread:$0]  %s202, 128, %s205, %s193
        $region24: #{tpu_custom_call.1} parent=15 // pred_fallthru
          _
        // Predicated region
        $region25: #{tpu_custom_call.1} parent=15 // pred_check
          %p208 = pneg %p115
        $region26: #{tpu_custom_call.1} parent=15 // pred_check_branch
          %210 = sbr.rel (%p208) target = $region28
        $region27: #{tpu_custom_call.1} parent=15 // pred_region
          %s211 = sand.u32 %s18, 1
          %s212 = scalar_lea.sflag [#allocation8], %s211
          %s213 = sand.u32 %s105, 1
          %s214 = smul.addr %s213, 8
          %s215 = scalar_lea.vmem [#allocation9], %s214
          %s217 = ssub.s32 128, 128
          %218 = vsyncadd %s212, %s217
          %s219 = sadd.s32 %s27, %s25
          %s220 = smul.addr %s219, 128
          %s221 = scalar_lea.hbm %s2, %s220
          %s223 = sshll.u32 %s215, 4
          %s224 = int_to_ptr.vmem [resolvable:$true] %s223
          %226 = dma.hbm_to_vmem [thread:$0]  %s221, 128, %s224, %s212
        $region28: #{tpu_custom_call.1} parent=15 // pred_fallthru
          _
      $region16: #{tpu_custom_call.1} parent=5 // pred_fallthru
        _
      %p227 = scmp.le.s32.totalorder 1, %s18
      %p228 = scmp.lt.s32.totalorder %s18, 3
      %p229 = pnand %p227, %p228
      %p230 = pneg %p229
      // Predicated region
      $region29: #{tpu_custom_call.1} parent=5 // pred_check
        _
      $region30: #{tpu_custom_call.1} parent=5 // pred_check_branch
        %232 = sbr.rel (%p229) target = $region32
      $region31: #{tpu_custom_call.1} parent=5 // pred_region
        %s233 = ssub.s32 %s18, 1
        %s234 = sand.u32 %s52, 1
        %s235 = scalar_lea.sflag [#allocation5], %s234
        %s236 = sand.u32 %s52, 1
        %s237 = smul.addr %s236, 8
        %s238 = scalar_lea.vmem [#allocation4], %s237
        // Predicated region
        $region33: #{tpu_custom_call.1} parent=31 // pred_check
          %p239 = pneg %p65
        $region34: #{tpu_custom_call.1} parent=31 // pred_check_branch
          %241 = sbr.rel (%p239) target = $region36
        $region35: #{tpu_custom_call.1} parent=31 // pred_region
          %242 = dma.done %s235, 128
        $region36: #{tpu_custom_call.1} parent=31 // pred_fallthru
          _
        %s243 = sand.u32 %s23, 1
        %s244 = scalar_lea.sflag [#allocation8], %s243
        %s245 = sand.u32 %s80, 1
        %s246 = smul.addr %s245, 8
        %s247 = scalar_lea.vmem [#allocation7], %s246
        // Predicated region
        $region37: #{tpu_custom_call.1} parent=31 // pred_check
          %p248 = pneg %p93
        $region38: #{tpu_custom_call.1} parent=31 // pred_check_branch
          %250 = sbr.rel (%p248) target = $region40
        $region39: #{tpu_custom_call.1} parent=31 // pred_region
          %251 = dma.done %s244, 128
        $region40: #{tpu_custom_call.1} parent=31 // pred_fallthru
          _
        %s252 = sand.u32 %s23, 1
        %s253 = scalar_lea.sflag [#allocation8], %s252
        %s254 = sand.u32 %s108, 1
        %s255 = smul.addr %s254, 8
        %s256 = scalar_lea.vmem [#allocation9], %s255
        // Predicated region
        $region41: #{tpu_custom_call.1} parent=31 // pred_check
          %p257 = pneg %p121
        $region42: #{tpu_custom_call.1} parent=31 // pred_check_branch
          %259 = sbr.rel (%p257) target = $region44
        $region43: #{tpu_custom_call.1} parent=31 // pred_region
          %260 = dma.done %s253, 128
        $region44: #{tpu_custom_call.1} parent=31 // pred_fallthru
          _
        %s261 = sand.u32 %s52, 1
        %s262 = scalar_lea.sflag [#allocation5], %s261
        %s263 = sand.u32 %s52, 1
        %s264 = smul.addr %s263, 8
        %s265 = scalar_lea.vmem [#allocation4], %s264
        %p266 = pneg %p65
        %p267 = pneg %p62
        %s268 = sand.u32 %s23, 1
        %s269 = scalar_lea.sflag [#allocation8], %s268
        %s270 = sand.u32 %s80, 1
        %s271 = smul.addr %s270, 8
        %s272 = scalar_lea.vmem [#allocation7], %s271
        %p273 = pneg %p93
        %p274 = pneg %p90
        %s275 = sand.u32 %s23, 1
        %s276 = scalar_lea.sflag [#allocation8], %s275
        %s277 = sand.u32 %s108, 1
        %s278 = smul.addr %s277, 8
        %s279 = scalar_lea.vmem [#allocation9], %s278
        %p280 = pneg %p121
        %p281 = pneg %p118
        %p282 = pneg %p151
        %p283 = pneg %p148
        %s284 = sand.u32 %s138, 1
        %s285 = scalar_lea.sflag [#allocation6], %s284
        %s286 = sand.u32 %s138, 1
        %s287 = smul.addr %s286, 8
        %s288 = scalar_lea.vmem [#allocation10], %s287
        %p289 = scmp.eq.s32.totalorder %s30, 0
        // Predicated region
        $region45: #{tpu_custom_call.1} parent=31 // pred_check
          %p290 = pneg %p289
        $region46: #{tpu_custom_call.1} parent=31 // pred_check_branch
          %292 = sbr.rel (%p290) target = $region48
        $region47: #{tpu_custom_call.1} parent=31 // pred_region
          %v293 = vld [vmem:[%s238] sm:$0xff]
          %v294 = vld [vmem:[%s247] sm:$0xff]
          %v295 = vmul.f32 %v293, %v293
          %v296 = vmul.f32 %v294, %v294
          %v297 = vadd.f32 %v295, %v296
          %vm298 = vcmask 261120
          %v299 = vsel %vm298, %v297, 0.0
          %300 = vadd.xlane.f32.xlu0 %v299
          %v301 = vpop.xlane.xlu0 %300
          %v302 = vmul.f32 %v301, 0.25
          %vm303 = vcmask 7168
          %304 = vst.msk [vmem:[#allocation2] sm:$0xff] %vm303, %v302
          %v305 = vmul.f32 %v293, 0.5
          %306 = vst.msk [vmem:[#allocation3] sm:$0xff] %vm298, %v305
        $region48: #{tpu_custom_call.1} parent=31 // pred_fallthru
          _
        %v307 = vld [vmem:[%s256] sm:$0xff]
        %v308 = vld [vmem:[#allocation3] sm:$0xff]
        %vm309 = vcmask 261120
        %v311 = vsel %vm309, %v308, 0
        %v314 = vsel %vm309, %v307, 0
        %316 = vmatprep.subr.mxu0 0.0
        %317 = vmatpush1.xpose.msra.mxu0 0.0
        %318 = vmatprep.subr.mxu0 0.0
        %319 = vmatpush1.xpose.msra.mxu0 0.0
        %320 = vmatprep.subr.mxu0 0.0
        %321 = vmatpush1.xpose.msra.mxu0 0.0
        %322 = vmatprep.subr.mxu0 0.0
        %323 = vmatpush1.xpose.msra.mxu0 0.0
        %324 = vmatprep.subr.mxu0 0.0
        %325 = vmatpush1.xpose.msra.mxu0 0.0
        %326 = vmatprep.subr.mxu0 0.0
        %327 = vmatpush1.xpose.msra.mxu0 0.0
        %328 = vmatprep.subr.mxu0 0.0
        %329 = vmatpush1.xpose.msra.mxu0 0.0
        %330 = vmatprep.subr.mxu0 0.0
        %331 = vmatpush1.xpose.msra.mxu0 0.0
        %332 = vmatprep.subr.mxu0 0.0
        %333 = vmatpush1.xpose.msra.mxu0 0.0
        %334 = vmatprep.subr.mxu0 0.0
        %335 = vmatpush1.xpose.msra.mxu0 0.0
        %336 = vmatprep.subr.mxu0 0.0
        %337 = vmatpush1.xpose.msra.mxu0 0.0
        %338 = vmatprep.subr.mxu0 0.0
        %339 = vmatpush1.xpose.msra.mxu0 0.0
        %340 = vmatprep.subr.mxu0 0.0
        %341 = vmatpush1.xpose.msra.mxu0 0.0
        %342 = vmatprep.subr.mxu0 0.0
        %343 = vmatpush1.xpose.msra.mxu0 0.0
        %344 = vmatprep.subr.mxu0 0.0
        %345 = vmatpush1.xpose.msra.mxu0 0.0
        %346 = vmatprep.subr.mxu0 0.0
        %347 = vmatpush1.xpose.msra.mxu0 %v314
        %348 = vmatprep.subr.mxu0 0.0
        %349 = vmatpush2.xpose.msra.mxu0 0.0
        %350 = vmatprep.subr.mxu0 0.0
        %351 = vmatpush2.xpose.msra.mxu0 0.0
        %352 = vmatprep.subr.mxu0 0.0
        %353 = vmatpush2.xpose.msra.mxu0 0.0
        %354 = vmatprep.subr.mxu0 0.0
        %355 = vmatpush2.xpose.msra.mxu0 0.0
        %356 = vmatprep.subr.mxu0 0.0
        %357 = vmatpush2.xpose.msra.mxu0 0.0
        %358 = vmatprep.subr.mxu0 0.0
        %359 = vmatpush2.xpose.msra.mxu0 0.0
        %360 = vmatprep.subr.mxu0 0.0
        %361 = vmatpush2.xpose.msra.mxu0 0.0
        %362 = vmatprep.subr.mxu0 0.0
        %363 = vmatpush2.xpose.msra.mxu0 0.0
        %364 = vmatprep.subr.mxu0 0.0
        %365 = vmatpush2.xpose.msra.mxu0 0.0
        %366 = vmatprep.subr.mxu0 0.0
        %367 = vmatpush2.xpose.msra.mxu0 0.0
        %368 = vmatprep.subr.mxu0 0.0
        %369 = vmatpush2.xpose.msra.mxu0 0.0
        %370 = vmatprep.subr.mxu0 0.0
        %371 = vmatpush2.xpose.msra.mxu0 0.0
        %372 = vmatprep.subr.mxu0 0.0
        %373 = vmatpush2.xpose.msra.mxu0 0.0
        %374 = vmatprep.subr.mxu0 0.0
        %375 = vmatpush2.xpose.msra.mxu0 0.0
        %376 = vmatprep.subr.mxu0 0.0
        %377 = vmatpush2.xpose.msra.mxu0 0.0
        %378 = vmatprep.subr.mxu0 0.0
        %379 = vmatpush2.xpose.msra.mxu0 0.0
        %380 = vmatprep.mubr.f32.mxu0 0.0
        %381 = vmatmul.mubr.f32.gmra.mxu0 %v311
        %v382 = vpop.f32.mrf.mxu0
        %v383 = vadd.f32 0.0, %v382
        %v384 = vpop.f32.mrf.mxu0
        %385 = vdwg.mxu0
        %v386 = vld [vmem:[#allocation2] sm:$0xff]
        %388 = vset.pattern.permute.xlu0 0
        %389 = vperm.xlu0 %388, %v386
        %v390 = vpop.permute.xlu0 %389
        %v392 = vsub.f32 %v390, %v383
        %v393 = vmax.f32 %v392, 0.0
        %v394 = vrsqrt.pop %v393
        %v395 = vmul.f32 %v393, %v394
        %vm396 = vcmp.eq.f32.partialorder %v393, inf
        %v397 = vsel %vm396, %v393, %v395
        %vm398 = vcmp.eq.f32.partialorder %v393, 0.0
        %v399 = vand.u32 %v393, 2147483648
        %v400 = vsel %vm398, %v399, %v397
        %vm401 = vcmask 64512
        %402 = vst.msk [vmem:[%s288] sm:$0xff] %vm401, %v400
        %s403 = sand.u32 %s138, 1
        %s404 = scalar_lea.sflag [#allocation6], %s403
        %s405 = sand.u32 %s138, 1
        %s406 = smul.addr %s405, 8
        %s407 = scalar_lea.vmem [#allocation10], %s406
        // Predicated region
        $region49: #{tpu_custom_call.1} parent=31 // pred_check
          %p408 = pneg %p148
        $region50: #{tpu_custom_call.1} parent=31 // pred_check_branch
          %410 = sbr.rel (%p408) target = $region52
        $region51: #{tpu_custom_call.1} parent=31 // pred_region
          %s412 = ssub.s32 128, 128
          %413 = vsyncadd %s404, %s412
          %s414 = sadd.s32 %s30, %s29
          %s415 = sadd.s32 %s414, %s28
          %s416 = smul.addr %s415, 128
          %s417 = scalar_lea.hbm %s3, %s416
          %s419 = sshll.u32 %s407, 4
          %s420 = int_to_ptr.vmem [resolvable:$true] %s419
          %422 = dma.vmem_to_hbm [thread:$0]  %s420, 128, %s417, %s404
        $region52: #{tpu_custom_call.1} parent=31 // pred_fallthru
          _
      $region32: #{tpu_custom_call.1} parent=5 // pred_fallthru
        _
      %p423 = scmp.le.s32.totalorder 2, %s18
      // Predicated region
      $region53: #{tpu_custom_call.1} parent=5 // pred_check
        %p424 = pneg %p423
      $region54: #{tpu_custom_call.1} parent=5 // pred_check_branch
        %426 = sbr.rel (%p424) target = $region56
      $region55: #{tpu_custom_call.1} parent=5 // pred_region
        %s427 = ssub.s32 %s18, 2
        // Predicated region
        $region57: #{tpu_custom_call.1} parent=55 // pred_check
          %p428 = pneg %p154
        $region58: #{tpu_custom_call.1} parent=55 // pred_check_branch
          %430 = sbr.rel (%p428) target = $region60
        $region59: #{tpu_custom_call.1} parent=55 // pred_region
          %s431 = sand.u32 %s139, 1
          %s432 = scalar_lea.sflag [#allocation6], %s431
          %s433 = sand.u32 %s139, 1
          %s434 = smul.addr %s433, 8
          %s435 = scalar_lea.vmem [#allocation10], %s434
          %436 = dma.done %s432, 128
        $region60: #{tpu_custom_call.1} parent=55 // pred_fallthru
          _
      $region56: #{tpu_custom_call.1} parent=5 // pred_fallthru
        _
    $region6: #{tpu_custom_call.1} parent=1 // loop_footer
      %s22 = sadd.s32 1, %s18
    $region7: #{tpu_custom_call.1} parent=1 // loop_footer_branch
      %17 = sbr.rel target = $region3
    $region8: #{tpu_custom_call.1} parent=1 // loop_exit
      _
    %437 = vsyncpa [#allocation5], 1
    %s438 = scalar_lea.sflag [#allocation5], 1
    %439 = vsyncpa %s438, 1
    %440 = vsyncpa [#allocation8], 1
    %s441 = scalar_lea.sflag [#allocation8], 1
    %442 = vsyncpa %s441, 1
    %443 = vsyncpa [#allocation6], 1
    %s444 = scalar_lea.sflag [#allocation6], 1
    %445 = vsyncpa %s444, 1

</llo_original>
